<compile_context>
chip_gen: v7x
topology: tpu7x:2x2x1
jax: 0.10.0
libtpu: 0.0.40
codegen_flags: <defaults>
</compile_context>

<pallas_src>
import functools

import jax
import jax.numpy as jnp
from jax.experimental import pallas as pl
from jax.experimental.pallas import tpu as pltpu


def _layernorm_kernel(x_ref, wb_ref, o_ref, *, eps, hidden_true):
    """Per-row LayerNorm on a (rb, Hp) tile; Hp may be lane-padded past hidden_true."""
    x = x_ref[...].astype(jnp.float32)                      # (rb, Hp)
    hp = x.shape[-1]
    inv_h = 1.0 / float(hidden_true)
    # Padded lanes of x are zero (wrapper zero-pads), so sum * 1/H_true == mean.
    u = jnp.sum(x, axis=-1, keepdims=True) * inv_h          # (rb, 1)
    xc = x - u
    sq = xc * xc
    if hp != hidden_true:
        # Mask padded lanes out of the variance (they would contribute (-u)^2).
        lane = jax.lax.broadcasted_iota(jnp.int32, (1, hp), 1)
        sq = jnp.where(lane < hidden_true, sq, 0.0)
    s = jnp.sum(sq, axis=-1, keepdims=True) * inv_h         # (rb, 1)
    y = xc * jax.lax.rsqrt(s + eps)                         # EUP rsqrt (free slot)
    wb = wb_ref[...].astype(jnp.float32)                    # (2, Hp): [weight; bias]
    o_ref[...] = (y * wb[0:1, :] + wb[1:2, :]).astype(o_ref.dtype)


def _sublane_multiple(dtype):
    # Sublane packing: 8 rows for 32-bit, 16 for 16-bit, 32 for 8-bit dtypes.
    itemsize = jnp.dtype(dtype).itemsize
    return max(8, 32 // max(itemsize, 1))


def _round_up(v, m):
    return ((v + m - 1) // m) * m


def _vmem_budgets():
    """Return (per-block VMEM budget, vmem_limit_bytes), generation-aware."""
    cap = None
    try:
        info = pltpu.get_tpu_info()
        cap = getattr(info, "vmem_capacity_bytes", None)
    except Exception:
        cap = None
    if cap is not None and cap >= (96 << 20):
        # v5e / v6e: 128 MiB VMEM -> bigger resident tiles, fewer step bubbles.
        return 48 << 20, 64 << 20
    # v7x (64 MiB physical, 32 MiB scoped default) or unknown: stay conservative.
    return 20 << 20, 40 << 20


def _pick_row_block(rows, hidden_p, in_dtype, out_dtype, block_budget,
                    target_block_bytes=8 << 20):
    """Sublane-aligned row tile sized by bytes, VMEM-capped, megacore-balanced."""
    sub = _sublane_multiple(in_dtype)
    in_sz = jnp.dtype(in_dtype).itemsize
    out_sz = jnp.dtype(out_dtype).itemsize
    # Per block row: double-buffered input + double-buffered output blocks,
    # plus ~3 live f32 (rb, Hp) intermediates inside the kernel body.
    per_row = hidden_p * (2 * in_sz + 2 * out_sz + 3 * 4)
    cap = max(sub, ((block_budget // per_row) // sub) * sub)
    # Target a fixed number of INPUT bytes per block so per-step overhead
    # (~0.35 us) is amortized regardless of hidden size.
    target = max(sub, ((target_block_bytes // (hidden_p * in_sz)) // sub) * sub)
    rows_padded = _round_up(rows, sub)
    rb = min(cap, target, rows_padded)
    rb = max(sub, (rb // sub) * sub)

    # Megacore load balance (v7x: 2 TCs share the "parallel" grid axis): for
    # short grids make the step count even and blocks near-equal so a ragged
    # tail does not pin almost all work on one core.
    n = pl.cdiv(rows, rb)
    if rows_padded > sub and n <= 8:
        if n < 2:
            n = 2
        elif n % 2 == 1:
            n += 1
        rb_bal = _round_up(pl.cdiv(rows_padded, n), sub)
        rb = max(sub, min(rb, rb_bal))
    return rb


def layer_norm(x, weight, bias, eps=1e-5):
    """TF-style LayerNorm (eps inside sqrt), normalizing the last axis."""
    orig_shape = x.shape
    hidden = orig_shape[-1]
    rows = 1
    for d in orig_shape[:-1]:
        rows *= d
    rows = max(rows, 1)
    x2d = x.reshape(rows, hidden)

    # Lane padding: keep (rb, Hp) blocks lane-dense (Hp multiple of 128) so the
    # output store path is unmasked vst instead of vst.msk partial stores.
    hp = _round_up(hidden, 128)
    if hp != hidden:
        x2d = jnp.pad(x2d, ((0, 0), (0, hp - hidden)))
        w1 = jnp.pad(weight.reshape(hidden), (0, hp - hidden))
        b1 = jnp.pad(bias.reshape(hidden), (0, hp - hidden))
    else:
        w1 = weight.reshape(hidden)
        b1 = bias.reshape(hidden)
    # Pack weight/bias into one (2, Hp) resident block: a single tiny DMA stream.
    wb = jnp.stack([w1, b1], axis=0)

    block_budget, vmem_limit = _vmem_budgets()
    rb = _pick_row_block(rows, hp, x.dtype, x.dtype, block_budget)
    grid = (pl.cdiv(rows, rb),)

    dsize = jnp.dtype(x.dtype).itemsize
    wsize = jnp.dtype(wb.dtype).itemsize
    cost = pl.CostEstimate(
        flops=int(10 * rows * hp),
        transcendentals=int(rows),
        bytes_accessed=int(2 * rows * hp * dsize + 2 * hp * wsize),
    )

    out = pl.pallas_call(
        functools.partial(_layernorm_kernel, eps=eps, hidden_true=hidden),
        out_shape=jax.ShapeDtypeStruct((rows, hp), x.dtype),
        grid_spec=pltpu.PrefetchScalarGridSpec(
            num_scalar_prefetch=0,
            grid=grid,
            in_specs=[
                pl.BlockSpec((rb, hp), lambda i: (i, 0)),
                pl.BlockSpec((2, hp), lambda i: (0, 0)),
            ],
            out_specs=pl.BlockSpec((rb, hp), lambda i: (i, 0)),
        ),
        compiler_params=pltpu.CompilerParams(
            dimension_semantics=("parallel",),
            vmem_limit_bytes=vmem_limit,
        ),
        cost_estimate=cost,
    )(x2d, wb)

    if hp != hidden:
        out = out[:, :hidden]
    return out.reshape(orig_shape)


def _ref_layer_norm(x, weight, bias, eps=1e-5):
    u = jnp.mean(x, axis=-1, keepdims=True)
    s = jnp.mean((x - u) ** 2, axis=-1, keepdims=True)
    return weight * ((x - u) / jnp.sqrt(s + eps)) + bias


if __name__ == "__main__":
    key = jax.random.PRNGKey(0)
    batch, seq, hidden = 2, 8, 128  # lane-dense hidden (multiple of 128)

    x = jax.random.normal(key, (batch, seq, hidden), dtype=jnp.float32)
    # Deterministic params, matching nn.Parameter(torch.ones/zeros(hidden)).
    weight = jnp.ones((hidden,), dtype=jnp.float32)
    bias = jnp.zeros((hidden,), dtype=jnp.float32)

    out = layer_norm(x, weight, bias, eps=1e-5)
    jax.block_until_ready(out)
    ref = _ref_layer_norm(x, weight, bias, eps=1e-5)
    assert jnp.allclose(out, ref, atol=1e-5, rtol=1e-5)

    # Second check: non-trivial affine params, rows that don't divide the row
    # block, and a non-128-multiple hidden (exercises the lane-padding +
    # masked-variance path and the ragged last row block).
    k1, k2, k3 = jax.random.split(jax.random.PRNGKey(0), 3)
    h2 = 96
    x2 = jax.random.normal(k1, (3, 5, h2), dtype=jnp.float32)
    w2 = jax.random.normal(k2, (h2,), dtype=jnp.float32)
    b2 = jax.random.normal(k3, (h2,), dtype=jnp.float32)
    out2 = layer_norm(x2, w2, b2, eps=1e-5)
    jax.block_until_ready(out2)
    ref2 = _ref_layer_norm(x2, w2, b2, eps=1e-5)
    assert jnp.allclose(out2, ref2, atol=1e-5, rtol=1e-5)

    print("KERNEL_OK")
</pallas_src>

<mosaic_0001>
module attributes {stable_mosaic.version = 11 : i64} {
  func.func @_layernorm_kernel(%arg0: i32, %arg1: memref<8x128xf32, #tpu.memory_space<vmem>>, %arg2: memref<2x128xf32, #tpu.memory_space<vmem>>, %arg3: memref<8x128xf32, #tpu.memory_space<vmem>>) attributes {dimension_semantics = [#tpu.dimension_semantics<parallel>], iteration_bounds = array<i64: 2>, scalar_prefetch = 0 : i64, scratch_operands = 0 : i64, tpu.core_type = #tpu.core_type<tc>, window_params = [{transform_indices = @transform_0, window_bounds = array<i64: 8, 128>}, {pipeline_mode = #tpu.pipeline_mode<synchronous>, transform_indices = @transform_1, window_bounds = array<i64: 2, 128>}, {transform_indices = @transform_2, window_bounds = array<i64: 8, 128>}]} {
    %c0 = arith.constant 0 : index
    %c0_0 = arith.constant 0 : index
    %0 = vector.load %arg1[%c0, %c0_0] : memref<8x128xf32, #tpu.memory_space<vmem>>, vector<8x128xf32>
    %cst = arith.constant dense<0.000000e+00> : vector<8xf32>
    %1 = vector.multi_reduction <add>, %0, %cst [1] : vector<8x128xf32> to vector<8xf32>
    %2 = vector.shape_cast %1 : vector<8xf32> to vector<8x1xf32>
    %cst_1 = arith.constant 7.812500e-03 : f32
    %3 = vector.broadcast %cst_1 : f32 to vector<8x1xf32>
    %4 = arith.mulf %2, %3 : vector<8x1xf32>
    %5 = vector.broadcast %4 : vector<8x1xf32> to vector<8x128xf32>
    %6 = arith.subf %0, %5 : vector<8x128xf32>
    %7 = arith.mulf %6, %6 : vector<8x128xf32>
    %cst_2 = arith.constant dense<0.000000e+00> : vector<8xf32>
    %8 = vector.multi_reduction <add>, %7, %cst_2 [1] : vector<8x128xf32> to vector<8xf32>
    %9 = vector.shape_cast %8 : vector<8xf32> to vector<8x1xf32>
    %cst_3 = arith.constant 7.812500e-03 : f32
    %10 = vector.broadcast %cst_3 : f32 to vector<8x1xf32>
    %11 = arith.mulf %9, %10 : vector<8x1xf32>
    %cst_4 = arith.constant 9.99999974E-6 : f32
    %12 = vector.broadcast %cst_4 : f32 to vector<8x1xf32>
    %13 = arith.addf %11, %12 : vector<8x1xf32>
    %14 = math.rsqrt %13 : vector<8x1xf32>
    %15 = vector.broadcast %14 : vector<8x1xf32> to vector<8x128xf32>
    %16 = arith.mulf %6, %15 : vector<8x128xf32>
    %c0_5 = arith.constant 0 : index
    %c0_6 = arith.constant 0 : index
    %17 = vector.load %arg2[%c0_5, %c0_6] : memref<2x128xf32, #tpu.memory_space<vmem>>, vector<2x128xf32>
    %18 = vector.extract_strided_slice %17 {offsets = [0, 0], sizes = [1, 128], strides = [1, 1]} : vector<2x128xf32> to vector<1x128xf32>
    %19 = vector.broadcast %18 : vector<1x128xf32> to vector<8x128xf32>
    %20 = arith.mulf %16, %19 : vector<8x128xf32>
    %21 = vector.extract_strided_slice %17 {offsets = [1, 0], sizes = [1, 128], strides = [1, 1]} : vector<2x128xf32> to vector<1x128xf32>
    %22 = vector.broadcast %21 : vector<1x128xf32> to vector<8x128xf32>
    %23 = arith.addf %20, %22 : vector<8x128xf32>
    %c0_7 = arith.constant 0 : index
    %c0_8 = arith.constant 0 : index
    %24 = vector.load %arg3[%c0_7, %c0_8] : memref<8x128xf32, #tpu.memory_space<vmem>>, vector<8x128xf32>
    tpu.vector_store %arg3[%c0_7, %c0_8], %23 {strides = array<i32>} : memref<8x128xf32, #tpu.memory_space<vmem>>, vector<8x128xf32>,
    return
  }
  func.func @transform_0(%arg0: i32) -> (i32, i32) {
    %c0_i32 = arith.constant 0 : i32
    %c0_i32_0 = arith.constant 0 : i32
    return %arg0, %c0_i32 : i32, i32
  }
  func.func @transform_1(%arg0: i32) -> (i32, i32) {
    %c0_i32 = arith.constant 0 : i32
    %c0_i32_0 = arith.constant 0 : i32
    %c0_i32_1 = arith.constant 0 : i32
    return %c0_i32, %c0_i32_0 : i32, i32
  }
  func.func @transform_2(%arg0: i32) -> (i32, i32) {
    %c0_i32 = arith.constant 0 : i32
    %c0_i32_0 = arith.constant 0 : i32
    return %arg0, %c0_i32 : i32, i32
  }
}

</mosaic_0001>

<llo_original>
// kernel: tpu_custom_call.1
$region0: #{tpu_custom_call.1}
  #allocation0 [shape = 'u32[]', space=smem, size = 0x4, offset = 0x4, fixed_abs, tag = 'smem constant byte address 0x4 - core index']
  #allocation1 [shape = 'u32[144,128]{1,0:T(1,128)}', space=vmem, size = 0x12000, scoped, tag = 'internal scratch']
  %s0 = inlined_call_operand.hbm [shape: f32[16,128], index: 0, kind: input, shape index: {}]
  %s1 = inlined_call_operand.vmem [shape: f32[2,128], index: 1, kind: input, shape index: {}]
  %s2 = inlined_call_operand.hbm [shape: f32[16,128], index: 2, kind: output, shape index: {}]
  %s3 = sld [smem:[#allocation0]]
  $region45: #{tpu_custom_call.1} parent=0
    _
  %s5 = ssub.s32 1, %s3
  %s6 = scalar_select 0, %s5, %s3
  $region1: #{tpu_custom_call.1} parent=0
    #allocation2 [shape = 'u8[8192]{0}', space=vmem, size = 0x2000, scoped, tag = 'input window, operand 0']
    #allocation3 [shape = 's32[2]{0}', space=sflag, size = 0x8, scoped, tag = 'scoped memory for tpu_custom_call.1']
    #allocation4 [shape = 's32[2]{0}', space=sflag, size = 0x8, scoped, tag = 'scoped memory for tpu_custom_call.1']
    #allocation5 [shape = 'u8[8192]{0}', space=vmem, size = 0x2000, scoped, tag = 'output window, operand 0']
    %7 = vsyncpa [#allocation3], 0
    %s8 = scalar_lea.sflag [#allocation3], 1
    %9 = vsyncpa %s8, 0
    %10 = vsyncpa [#allocation4], 0
    %s11 = scalar_lea.sflag [#allocation4], 1
    %12 = vsyncpa %s11, 0
    loop: start=0, step=1, limit=4
    $region2: #{tpu_custom_call.1} parent=1 // loop_pre_header
      _
    $region3: #{tpu_custom_call.1} parent=1 // loop_header
      %s14 = sphi 0, %s18
      %p15 = scmp.ge.s32.totalorder %s14, 4
      %s24 = sphi 0, %s26
      %s27 = sphi 0, %s24
      %s28 = sphi 0, %s27
      %s44 = sphi 0, %s28
      %s48 = sphi 0, %s48
      %s50 = sphi 0, %s48
      %s51 = sphi 0, %s50
      %s65 = sphi 0, %s51
      %s71 = sphi 0, %s73
      %s74 = sphi 0, %s71
      %s75 = sphi 0, %s74
      %s91 = sphi 0, %s75
    $region4: #{tpu_custom_call.1} parent=1 // loop_header_branch
      %17 = sbr.rel (%p15) target = $region8
    $region5: #{tpu_custom_call.1} parent=1 // loop_body
      %s19 = ssub.s32 %s14, 1
      %s20 = ssub.s32 %s14, 2
      %s21 = sadd.s32 %s14, 1
      %s22 = ssub.s32 %s14, %s21
      %p23 = scmp.eq.s32.totalorder %s22, 0
      %s25 = sadd.s32 %s24, 1
      %s26 = scalar_select %p23, %s24, %s25
      %p29 = pneg %p23
      %p30 = scmp.eq.s32.totalorder %s14, 1
      %p31 = por %p29, %p30
      %p32 = scmp.ne.s32.totalorder %s24, %s27
      %p33 = scmp.eq.s32.totalorder %s14, 0
      %p34 = por %p32, %p33
      %p35 = scmp.ne.s32.totalorder %s24, %s27
      %p36 = scmp.eq.s32.totalorder %s19, 1
      %p37 = por %p35, %p36
      %p38 = scmp.ne.s32.totalorder %s27, %s28
      %p39 = scmp.eq.s32.totalorder %s19, 0
      %p40 = por %p38, %p39
      %p41 = scmp.ne.s32.totalorder %s27, %s28
      %p42 = scmp.eq.s32.totalorder %s20, 1
      %p43 = por %p41, %p42
      %p45 = scmp.ne.s32.totalorder %s28, %s44
      %p46 = scmp.eq.s32.totalorder %s20, 0
      %p47 = por %p45, %p46
      %s49 = sadd.s32 %s48, 1
      %p52 = scmp.eq.s32.totalorder %s14, 1
      %p53 = scmp.ne.s32.totalorder %s48, %s50
      %p54 = scmp.eq.s32.totalorder %s14, 0
      %p55 = por %p53, %p54
      %p56 = scmp.ne.s32.totalorder %s48, %s50
      %p57 = scmp.eq.s32.totalorder %s19, 1
      %p58 = por %p56, %p57
      %p59 = scmp.ne.s32.totalorder %s50, %s51
      %p60 = scmp.eq.s32.totalorder %s19, 0
      %p61 = por %p59, %p60
      %p62 = scmp.ne.s32.totalorder %s50, %s51
      %p63 = scmp.eq.s32.totalorder %s20, 1
      %p64 = por %p62, %p63
      %p66 = scmp.ne.s32.totalorder %s51, %s65
      %p67 = scmp.eq.s32.totalorder %s20, 0
      %p68 = por %p66, %p67
      %s69 = ssub.s32 %s14, %s21
      %p70 = scmp.eq.s32.totalorder %s69, 0
      %s72 = sadd.s32 %s71, 1
      %s73 = scalar_select %p70, %s71, %s72
      %p76 = pneg %p70
      %p77 = scmp.eq.s32.totalorder %s14, 1
      %p78 = por %p76, %p77
      %p79 = scmp.ne.s32.totalorder %s71, %s74
      %p80 = scmp.eq.s32.totalorder %s14, 0
      %p81 = por %p79, %p80
      %p82 = scmp.ne.s32.totalorder %s71, %s74
      %p83 = scmp.eq.s32.totalorder %s19, 1
      %p84 = por %p82, %p83
      %p85 = scmp.ne.s32.totalorder %s74, %s75
      %p86 = scmp.eq.s32.totalorder %s19, 0
      %p87 = por %p85, %p86
      %p88 = scmp.ne.s32.totalorder %s74, %s75
      %p89 = scmp.eq.s32.totalorder %s20, 1
      %p90 = por %p88, %p89
      %p92 = scmp.ne.s32.totalorder %s75, %s91
      %p93 = scmp.eq.s32.totalorder %s20, 0
      %p94 = por %p92, %p93
      %p95 = scmp.le.s32.totalorder 1, %s14
      %p96 = scmp.lt.s32.totalorder %s14, 3
      %p97 = pnand %p95, %p96
      %p98 = pneg %p97
      // Predicated region
      $region9: #{tpu_custom_call.1} parent=5 // pred_check
        _
      $region10: #{tpu_custom_call.1} parent=5 // pred_check_branch
        %100 = sbr.rel (%p97) target = $region12
      $region11: #{tpu_custom_call.1} parent=5 // pred_region
        %s101 = ssub.s32 %s14, 1
        // Predicated region
        $region13: #{tpu_custom_call.1} parent=11 // pred_check
          %p102 = pneg %p61
        $region14: #{tpu_custom_call.1} parent=11 // pred_check_branch
          %104 = sbr.rel (%p102) target = $region16
        $region15: #{tpu_custom_call.1} parent=11 // pred_region
          _
        $region16: #{tpu_custom_call.1} parent=11 // pred_fallthru
          _
      $region12: #{tpu_custom_call.1} parent=5 // pred_fallthru
        _
      %p105 = scmp.lt.s32.totalorder %s14, 2
      // Predicated region
      $region17: #{tpu_custom_call.1} parent=5 // pred_check
        %p106 = pneg %p105
      $region18: #{tpu_custom_call.1} parent=5 // pred_check_branch
        %108 = sbr.rel (%p106) target = $region20
      $region19: #{tpu_custom_call.1} parent=5 // pred_region
        // Predicated region
        $region21: #{tpu_custom_call.1} parent=19 // pred_check
          %p109 = pneg %p34
        $region22: #{tpu_custom_call.1} parent=19 // pred_check_branch
          %111 = sbr.rel (%p109) target = $region24
        $region23: #{tpu_custom_call.1} parent=19 // pred_region
          %s112 = sand.u32 %s24, 1
          %s113 = scalar_lea.sflag [#allocation3], %s112
          %s114 = sand.u32 %s24, 1
          %s115 = smul.addr %s114, 8
          %s116 = scalar_lea.vmem [#allocation2], %s115
          %s118 = ssub.s32 128, 128
          %119 = vsyncadd %s113, %s118
          %s120 = smul.addr %s14, 128
          %s121 = scalar_lea.hbm %s0, %s120
          %s123 = sshll.u32 %s116, 4
          %s124 = int_to_ptr.vmem [resolvable:$true] %s123
          %126 = dma.hbm_to_vmem [thread:$0]  %s121, 128, %s124, %s113
        $region24: #{tpu_custom_call.1} parent=19 // pred_fallthru
          _
      $region20: #{tpu_custom_call.1} parent=5 // pred_fallthru
        _
      %p127 = scmp.le.s32.totalorder 1, %s14
      %p128 = scmp.lt.s32.totalorder %s14, 3
      %p129 = pnand %p127, %p128
      %p130 = pneg %p129
      // Predicated region
      $region25: #{tpu_custom_call.1} parent=5 // pred_check
        _
      $region26: #{tpu_custom_call.1} parent=5 // pred_check_branch
        %132 = sbr.rel (%p129) target = $region28
      $region27: #{tpu_custom_call.1} parent=5 // pred_region
        %s133 = ssub.s32 %s14, 1
        %s134 = sand.u32 %s27, 1
        %s135 = scalar_lea.sflag [#allocation3], %s134
        %s136 = sand.u32 %s27, 1
        %s137 = smul.addr %s136, 8
        %s138 = scalar_lea.vmem [#allocation2], %s137
        // Predicated region
        $region29: #{tpu_custom_call.1} parent=27 // pred_check
          %p139 = pneg %p40
        $region30: #{tpu_custom_call.1} parent=27 // pred_check_branch
          %141 = sbr.rel (%p139) target = $region32
        $region31: #{tpu_custom_call.1} parent=27 // pred_region
          %142 = dma.done %s135, 128
        $region32: #{tpu_custom_call.1} parent=27 // pred_fallthru
          _
        %s143 = sand.u32 %s27, 1
        %s144 = scalar_lea.sflag [#allocation3], %s143
        %s145 = sand.u32 %s27, 1
        %s146 = smul.addr %s145, 8
        %s147 = scalar_lea.vmem [#allocation2], %s146
        %p148 = pneg %p40
        %p149 = pneg %p37
        %p150 = pneg %p61
        %p151 = pneg %p58
        %p152 = pneg %p87
        %p153 = pneg %p84
        %s154 = sand.u32 %s74, 1
        %s155 = scalar_lea.sflag [#allocation4], %s154
        %s156 = sand.u32 %s74, 1
        %s157 = smul.addr %s156, 8
        %s158 = scalar_lea.vmem [#allocation5], %s157
        %v159 = vld [vmem:[%s138] sm:$0xff]
        %160 = vadd.xlane.f32.xlu0 %v159
        %v161 = vpop.xlane.xlu0 %160
        %v162 = vmul.f32 %v161, 0.0078125
        %v163 = vsub.f32 %v159, %v162
        %v164 = vmul.f32 %v163, %v163
        %165 = vadd.xlane.f32.xlu0 %v164
        %v166 = vpop.xlane.xlu0 %165
        %v167 = vmul.f32 %v166, 0.0078125
        %v168 = vadd.f32 %v167, 1e-05
        %v169 = vrsqrt.pop %v168
        %v170 = vmul.f32 %v163, %v169
        %v171 = vld [vmem:[%s1] sm:$0x3]
        %v172 = vlaneseq
        %v173 = vshrl.u32 %v172, 7
        %v174 = vsub.s32 0, %v173
        %v175 = vrot.slane %v171, %v174
        %v176 = vmul.f32 %v170, %v175
        %v177 = vlaneseq
        %v178 = vshrl.u32 %v177, 7
        %v179 = vsub.s32 1, %v178
        %v180 = vrot.slane %v171, %v179
        %v181 = vadd.f32 %v176, %v180
        %182 = vst [vmem:[%s158] sm:$0xff] %v181
        %s183 = sand.u32 %s74, 1
        %s184 = scalar_lea.sflag [#allocation4], %s183
        %s185 = sand.u32 %s74, 1
        %s186 = smul.addr %s185, 8
        %s187 = scalar_lea.vmem [#allocation5], %s186
        // Predicated region
        $region33: #{tpu_custom_call.1} parent=27 // pred_check
          %p188 = pneg %p84
        $region34: #{tpu_custom_call.1} parent=27 // pred_check_branch
          %190 = sbr.rel (%p188) target = $region36
        $region35: #{tpu_custom_call.1} parent=27 // pred_region
          %s192 = ssub.s32 128, 128
          %193 = vsyncadd %s184, %s192
          %s194 = smul.addr %s19, 128
          %s195 = scalar_lea.hbm %s2, %s194
          %s197 = sshll.u32 %s187, 4
          %s198 = int_to_ptr.vmem [resolvable:$true] %s197
          %200 = dma.vmem_to_hbm [thread:$0]  %s198, 128, %s195, %s184
        $region36: #{tpu_custom_call.1} parent=27 // pred_fallthru
          _
      $region28: #{tpu_custom_call.1} parent=5 // pred_fallthru
        _
      %p201 = scmp.le.s32.totalorder 2, %s14
      // Predicated region
      $region37: #{tpu_custom_call.1} parent=5 // pred_check
        %p202 = pneg %p201
      $region38: #{tpu_custom_call.1} parent=5 // pred_check_branch
        %204 = sbr.rel (%p202) target = $region40
      $region39: #{tpu_custom_call.1} parent=5 // pred_region
        %s205 = ssub.s32 %s14, 2
        // Predicated region
        $region41: #{tpu_custom_call.1} parent=39 // pred_check
          %p206 = pneg %p90
        $region42: #{tpu_custom_call.1} parent=39 // pred_check_branch
          %208 = sbr.rel (%p206) target = $region44
        $region43: #{tpu_custom_call.1} parent=39 // pred_region
          %s209 = sand.u32 %s75, 1
          %s210 = scalar_lea.sflag [#allocation4], %s209
          %s211 = sand.u32 %s75, 1
          %s212 = smul.addr %s211, 8
          %s213 = scalar_lea.vmem [#allocation5], %s212
          %214 = dma.done %s210, 128
        $region44: #{tpu_custom_call.1} parent=39 // pred_fallthru
          _
      $region40: #{tpu_custom_call.1} parent=5 // pred_fallthru
        _
    $region6: #{tpu_custom_call.1} parent=1 // loop_footer
      %s18 = sadd.s32 1, %s14
    $region7: #{tpu_custom_call.1} parent=1 // loop_footer_branch
      %13 = sbr.rel target = $region3
    $region8: #{tpu_custom_call.1} parent=1 // loop_exit
      _
    %215 = vsyncpa [#allocation3], 1
    %s216 = scalar_lea.sflag [#allocation3], 1
    %217 = vsyncpa %s216, 1
    %218 = vsyncpa [#allocation4], 1
    %s219 = scalar_lea.sflag [#allocation4], 1
    %220 = vsyncpa %s219, 1

</llo_original>
